<compile_context>
chip_gen: v6e
topology: v6e:2x2x1
jax: 0.10.0
libtpu: 0.0.40
codegen_flags: <defaults>
</compile_context>

<pallas_src>
import functools
import math

import jax
import jax.numpy as jnp
from jax.experimental import pallas as pl
from jax.experimental.pallas import tpu as pltpu


def _round_up(x: int, m: int) -> int:
    return (x + m - 1) // m * m


def _triplet_kernel(za_ref, zp_ref, zn_ref, out_ref, *,
                    margin: float, batch: int, k: int, d: int, blk: int):
    # Block of folded rows: (blk, k*d); each row packs k consecutive triplets
    # of width d along the lane axis (k == 1 when no fold was applied).
    za = za_ref[...].astype(jnp.float32)
    zp = zp_ref[...].astype(jnp.float32)
    zn = zn_ref[...].astype(jnp.float32)

    dp = za - zp
    dn = za - zn

    # Original (un-folded) triplet index of sublane r, group c in this block:
    #   gidx = program_id * blk * k + r * k + c   (valid iff gidx < batch)
    row = jax.lax.broadcasted_iota(jnp.int32, (blk, 1), 0)
    base = pl.program_id(0) * (blk * k)

    hinge_sum = jnp.zeros((blk, 1), jnp.float32)
    for c in range(k):  # k is small & static (1..16): unrolled at trace time
        sl = slice(c * d, (c + 1) * d)
        dpc = dp[:, sl]
        dnc = dn[:, sl]
        # Row-wise L2 norms: VPU mul + XLU lane reduce + EUP sqrt (all free
        # filler under the DMA).
        d1 = jnp.sqrt(jnp.sum(dpc * dpc, axis=-1, keepdims=True))
        d2 = jnp.sqrt(jnp.sum(dnc * dnc, axis=-1, keepdims=True))
        hinge = jnp.maximum(d1 - d2 + jnp.float32(margin), jnp.float32(0.0))
        valid = (base + row * k + c) < batch  # masks ragged/garbage rows
        hinge_sum = hinge_sum + jnp.where(valid, hinge, jnp.float32(0.0))

    # One f32 partial sum per grid step (avoids masked lane-sparse stores).
    psum = jnp.sum(hinge_sum, axis=0, keepdims=True)  # (1, 1)
    out_ref[...] = psum.reshape(1, 1, 1)


def _vmem_capacity_bytes() -> int:
    try:
        cap = int(pltpu.get_tpu_info().vmem_capacity_bytes)
        if cap > 0:
            return cap
    except Exception:
        pass
    return 64 * 1024 * 1024  # conservative default: v7x per-TensorCore VMEM


def _choose_block_rows(rows: int, width_pad: int, itemsize: int,
                       sub: int, tile_budget: int) -> int:
    # Bytes per block row: 3 inputs x 2 pipeline buffers in the native dtype,
    # plus ~8 full-width f32 temporaries (upcasts / diffs / squares) inside
    # the kernel body.
    per_row = width_pad * (3 * 2 * itemsize + 8 * 4)
    blk = max(sub, (tile_budget // per_row) // sub * sub)
    # Megacore (v7x): make sure there are >= 2 grid steps when possible.
    if blk >= rows and rows > sub:
        blk = _round_up((rows + 1) // 2, sub)
    return min(blk, _round_up(rows, sub))


def triplet_margin_loss(z_a, z_p, z_n, margin: float = 1.0):
    assert z_a.shape == z_p.shape == z_n.shape and z_a.ndim >= 2
    d = z_a.shape[-1]
    batch = int(math.prod(z_a.shape[:-1]))
    z_a = z_a.reshape(batch, d)
    z_p = z_p.reshape(batch, d)
    z_n = z_n.reshape(batch, d)

    # Fold rows onto the lane axis when D < 128 and divides 128 so vreg lanes
    # and DMA slabs are fully used. Contiguous reshape -> no data movement.
    k = 1
    if d < 128 and 128 % d == 0:
        k_cand = 128 // d
        if k_cand <= 16 and batch % k_cand == 0:
            k = k_cand
    rows = batch // k
    width = k * d
    z_a = z_a.reshape(rows, width)
    z_p = z_p.reshape(rows, width)
    z_n = z_n.reshape(rows, width)

    itemsize = jnp.dtype(z_a.dtype).itemsize
    sub = max(8, 32 // itemsize)         # sublane packing: f32 8, bf16 16, int8 32
    width_pad = _round_up(width, 128)    # lane-padded width actually held in VMEM

    # Generation-aware VMEM budget (v5e/v6e: 128 MiB, v7x: 64 MiB per core).
    vmem_cap = _vmem_capacity_bytes()
    vmem_limit = (vmem_cap * 3) // 4                   # ~96 MiB v5e/v6e, ~48 MiB v7x
    tile_budget = vmem_limit - 4 * 1024 * 1024         # headroom for compiler scratch

    # TODO(synk): feature dims so large that a single sublane-multiple row block
    # exceeds the VMEM budget would need a lane-tiled two-pass reduction.
    blk = _choose_block_rows(rows, width_pad, itemsize, sub, tile_budget)
    num_blocks = -(-rows // blk)         # NO input padding: ragged block masked in-kernel
    grid = (num_blocks,)

    kernel = functools.partial(_triplet_kernel, margin=float(margin),
                               batch=batch, k=k, d=d, blk=blk)

    partial_sums = pl.pallas_call(
        kernel,
        out_shape=jax.ShapeDtypeStruct((num_blocks, 1, 1), jnp.float32),
        grid_spec=pltpu.PrefetchScalarGridSpec(
            num_scalar_prefetch=0,
            grid=grid,
            in_specs=[
                pl.BlockSpec((blk, width), lambda i: (i, 0)),
                pl.BlockSpec((blk, width), lambda i: (i, 0)),
                pl.BlockSpec((blk, width), lambda i: (i, 0)),
            ],
            out_specs=pl.BlockSpec((1, 1, 1), lambda i: (i, 0, 0)),
        ),
        compiler_params=pltpu.CompilerParams(
            dimension_semantics=("parallel",),
            vmem_limit_bytes=int(vmem_limit),
        ),
        cost_estimate=pl.CostEstimate(
            flops=8 * batch * d,
            transcendentals=2 * batch,
            bytes_accessed=3 * batch * d * itemsize + num_blocks * 4,
        ),
    )(z_a, z_p, z_n)

    return jnp.sum(partial_sums) / jnp.float32(batch)


def _reference(z_a, z_p, z_n, margin: float = 1.0):
    # Plain-JAX mirror of the PyTorch module for sanity checking.
    d1 = jnp.linalg.norm(z_a.astype(jnp.float32) - z_p.astype(jnp.float32), axis=-1)
    d2 = jnp.linalg.norm(z_a.astype(jnp.float32) - z_n.astype(jnp.float32), axis=-1)
    return jnp.mean(jnp.maximum(d1 - d2 + jnp.float32(margin), 0.0))


if __name__ == "__main__":
    key = jax.random.PRNGKey(0)

    # Case 1: nominal small embedding batch (exercises the D<128 lane fold).
    ka, kp, kn = jax.random.split(key, 3)
    B, D = 8, 32
    z_a = jax.random.normal(ka, (B, D), dtype=jnp.float32)
    z_p = jax.random.normal(kp, (B, D), dtype=jnp.float32)
    z_n = jax.random.normal(kn, (B, D), dtype=jnp.float32)
    loss = jax.block_until_ready(triplet_margin_loss(z_a, z_p, z_n, margin=1.0))
    ref = jax.block_until_ready(_reference(z_a, z_p, z_n, margin=1.0))
    assert jnp.allclose(loss, ref, rtol=1e-5, atol=1e-5), (loss, ref)

    # Case 2: ragged grid (batch not a multiple of blk, no padding, 2 steps).
    kb = jax.random.split(key, 4)
    B2, D2 = 10, 48
    z_a2 = jax.random.normal(kb[0], (B2, D2), dtype=jnp.float32)
    z_p2 = jax.random.normal(kb[1], (B2, D2), dtype=jnp.float32)
    z_n2 = jax.random.normal(kb[2], (B2, D2), dtype=jnp.float32)
    loss2 = jax.block_until_ready(triplet_margin_loss(z_a2, z_p2, z_n2, margin=0.5))
    ref2 = jax.block_until_ready(_reference(z_a2, z_p2, z_n2, margin=0.5))
    assert jnp.allclose(loss2, ref2, rtol=1e-5, atol=1e-5), (loss2, ref2)

    print("KERNEL_OK")
</pallas_src>

<mosaic_0001>
module attributes {stable_mosaic.version = 11 : i64} {
  func.func @_triplet_kernel(%arg0: i32, %arg1: memref<8x128xf32, #tpu.memory_space<vmem>>, %arg2: memref<8x128xf32, #tpu.memory_space<vmem>>, %arg3: memref<8x128xf32, #tpu.memory_space<vmem>>, %arg4: memref<1x1x1xf32, #tpu.memory_space<vmem>>) attributes {dimension_semantics = [#tpu.dimension_semantics<parallel>], iteration_bounds = array<i64: 1>, scalar_prefetch = 0 : i64, scratch_operands = 0 : i64, tpu.core_type = #tpu.core_type<tc>, window_params = [{transform_indices = @transform_0, window_bounds = array<i64: 8, 128>}, {transform_indices = @transform_1, window_bounds = array<i64: 8, 128>}, {transform_indices = @transform_2, window_bounds = array<i64: 8, 128>}, {transform_indices = @transform_3, window_bounds = array<i64: 1, 1, 1>}]} {
    %c0 = arith.constant 0 : index
    %c0_0 = arith.constant 0 : index
    %0 = vector.load %arg1[%c0, %c0_0] : memref<8x128xf32, #tpu.memory_space<vmem>>, vector<8x128xf32>
    %c0_1 = arith.constant 0 : index
    %c0_2 = arith.constant 0 : index
    %1 = vector.load %arg2[%c0_1, %c0_2] : memref<8x128xf32, #tpu.memory_space<vmem>>, vector<8x128xf32>
    %c0_3 = arith.constant 0 : index
    %c0_4 = arith.constant 0 : index
    %2 = vector.load %arg3[%c0_3, %c0_4] : memref<8x128xf32, #tpu.memory_space<vmem>>, vector<8x128xf32>
    %3 = arith.subf %0, %1 : vector<8x128xf32>
    %4 = arith.subf %0, %2 : vector<8x128xf32>
    %5 = tpu.iota {dimensions = array<i32: 0>} : vector<8x1xi32>
    %c32_i32 = arith.constant 32 : i32
    %6 = arith.muli %arg0, %c32_i32 : i32
    %cst = arith.constant 0.000000e+00 : f32
    %7 = vector.broadcast %cst : f32 to vector<8x1xf32>
    %8 = vector.extract_strided_slice %3 {offsets = [0, 0], sizes = [8, 32], strides = [1, 1]} : vector<8x128xf32> to vector<8x32xf32>
    %9 = vector.extract_strided_slice %4 {offsets = [0, 0], sizes = [8, 32], strides = [1, 1]} : vector<8x128xf32> to vector<8x32xf32>
    %10 = arith.mulf %8, %8 : vector<8x32xf32>
    %cst_5 = arith.constant dense<0.000000e+00> : vector<8xf32>
    %11 = vector.multi_reduction <add>, %10, %cst_5 [1] : vector<8x32xf32> to vector<8xf32>
    %12 = vector.shape_cast %11 : vector<8xf32> to vector<8x1xf32>
    %13 = math.sqrt %12 : vector<8x1xf32>
    %14 = arith.mulf %9, %9 : vector<8x32xf32>
    %cst_6 = arith.constant dense<0.000000e+00> : vector<8xf32>
    %15 = vector.multi_reduction <add>, %14, %cst_6 [1] : vector<8x32xf32> to vector<8xf32>
    %16 = vector.shape_cast %15 : vector<8xf32> to vector<8x1xf32>
    %17 = math.sqrt %16 : vector<8x1xf32>
    %18 = arith.subf %13, %17 : vector<8x1xf32>
    %cst_7 = arith.constant 1.000000e+00 : f32
    %19 = vector.broadcast %cst_7 : f32 to vector<8x1xf32>
    %20 = arith.addf %18, %19 : vector<8x1xf32>
    %cst_8 = arith.constant 0.000000e+00 : f32
    %21 = vector.broadcast %cst_8 : f32 to vector<8x1xf32>
    %22 = arith.maximumf %20, %21 : vector<8x1xf32>
    %c4_i32 = arith.constant 4 : i32
    %23 = vector.broadcast %c4_i32 : i32 to vector<8x1xi32>
    %24 = arith.muli %5, %23 : vector<8x1xi32>
    %25 = vector.broadcast %6 : i32 to vector<8x1xi32>
    %26 = arith.addi %25, %24 : vector<8x1xi32>
    %c0_i32 = arith.constant 0 : i32
    %27 = vector.broadcast %c0_i32 : i32 to vector<8x1xi32>
    %28 = arith.addi %26, %27 : vector<8x1xi32>
    %c8_i32 = arith.constant 8 : i32
    %29 = vector.broadcast %c8_i32 : i32 to vector<8x1xi32>
    %30 = arith.cmpi slt, %28, %29 : vector<8x1xi32>
    %cst_9 = arith.constant 0.000000e+00 : f32
    %31 = vector.broadcast %cst_9 : f32 to vector<8x1xf32>
    %32 = arith.select %30, %22, %31 : vector<8x1xi1>, vector<8x1xf32>
    %33 = arith.addf %7, %32 : vector<8x1xf32>
    %34 = vector.extract_strided_slice %3 {offsets = [0, 32], sizes = [8, 32], strides = [1, 1]} : vector<8x128xf32> to vector<8x32xf32>
    %35 = vector.extract_strided_slice %4 {offsets = [0, 32], sizes = [8, 32], strides = [1, 1]} : vector<8x128xf32> to vector<8x32xf32>
    %36 = arith.mulf %34, %34 : vector<8x32xf32>
    %cst_10 = arith.constant dense<0.000000e+00> : vector<8xf32>
    %37 = vector.multi_reduction <add>, %36, %cst_10 [1] : vector<8x32xf32> to vector<8xf32>
    %38 = vector.shape_cast %37 : vector<8xf32> to vector<8x1xf32>
    %39 = math.sqrt %38 : vector<8x1xf32>
    %40 = arith.mulf %35, %35 : vector<8x32xf32>
    %cst_11 = arith.constant dense<0.000000e+00> : vector<8xf32>
    %41 = vector.multi_reduction <add>, %40, %cst_11 [1] : vector<8x32xf32> to vector<8xf32>
    %42 = vector.shape_cast %41 : vector<8xf32> to vector<8x1xf32>
    %43 = math.sqrt %42 : vector<8x1xf32>
    %44 = arith.subf %39, %43 : vector<8x1xf32>
    %cst_12 = arith.constant 1.000000e+00 : f32
    %45 = vector.broadcast %cst_12 : f32 to vector<8x1xf32>
    %46 = arith.addf %44, %45 : vector<8x1xf32>
    %cst_13 = arith.constant 0.000000e+00 : f32
    %47 = vector.broadcast %cst_13 : f32 to vector<8x1xf32>
    %48 = arith.maximumf %46, %47 : vector<8x1xf32>
    %c4_i32_14 = arith.constant 4 : i32
    %49 = vector.broadcast %c4_i32_14 : i32 to vector<8x1xi32>
    %50 = arith.muli %5, %49 : vector<8x1xi32>
    %51 = vector.broadcast %6 : i32 to vector<8x1xi32>
    %52 = arith.addi %51, %50 : vector<8x1xi32>
    %c1_i32 = arith.constant 1 : i32
    %53 = vector.broadcast %c1_i32 : i32 to vector<8x1xi32>
    %54 = arith.addi %52, %53 : vector<8x1xi32>
    %c8_i32_15 = arith.constant 8 : i32
    %55 = vector.broadcast %c8_i32_15 : i32 to vector<8x1xi32>
    %56 = arith.cmpi slt, %54, %55 : vector<8x1xi32>
    %cst_16 = arith.constant 0.000000e+00 : f32
    %57 = vector.broadcast %cst_16 : f32 to vector<8x1xf32>
    %58 = arith.select %56, %48, %57 : vector<8x1xi1>, vector<8x1xf32>
    %59 = arith.addf %33, %58 : vector<8x1xf32>
    %60 = vector.extract_strided_slice %3 {offsets = [0, 64], sizes = [8, 32], strides = [1, 1]} : vector<8x128xf32> to vector<8x32xf32>
    %61 = vector.extract_strided_slice %4 {offsets = [0, 64], sizes = [8, 32], strides = [1, 1]} : vector<8x128xf32> to vector<8x32xf32>
    %62 = arith.mulf %60, %60 : vector<8x32xf32>
    %cst_17 = arith.constant dense<0.000000e+00> : vector<8xf32>
    %63 = vector.multi_reduction <add>, %62, %cst_17 [1] : vector<8x32xf32> to vector<8xf32>
    %64 = vector.shape_cast %63 : vector<8xf32> to vector<8x1xf32>
    %65 = math.sqrt %64 : vector<8x1xf32>
    %66 = arith.mulf %61, %61 : vector<8x32xf32>
    %cst_18 = arith.constant dense<0.000000e+00> : vector<8xf32>
    %67 = vector.multi_reduction <add>, %66, %cst_18 [1] : vector<8x32xf32> to vector<8xf32>
    %68 = vector.shape_cast %67 : vector<8xf32> to vector<8x1xf32>
    %69 = math.sqrt %68 : vector<8x1xf32>
    %70 = arith.subf %65, %69 : vector<8x1xf32>
    %cst_19 = arith.constant 1.000000e+00 : f32
    %71 = vector.broadcast %cst_19 : f32 to vector<8x1xf32>
    %72 = arith.addf %70, %71 : vector<8x1xf32>
    %cst_20 = arith.constant 0.000000e+00 : f32
    %73 = vector.broadcast %cst_20 : f32 to vector<8x1xf32>
    %74 = arith.maximumf %72, %73 : vector<8x1xf32>
    %c4_i32_21 = arith.constant 4 : i32
    %75 = vector.broadcast %c4_i32_21 : i32 to vector<8x1xi32>
    %76 = arith.muli %5, %75 : vector<8x1xi32>
    %77 = vector.broadcast %6 : i32 to vector<8x1xi32>
    %78 = arith.addi %77, %76 : vector<8x1xi32>
    %c2_i32 = arith.constant 2 : i32
    %79 = vector.broadcast %c2_i32 : i32 to vector<8x1xi32>
    %80 = arith.addi %78, %79 : vector<8x1xi32>
    %c8_i32_22 = arith.constant 8 : i32
    %81 = vector.broadcast %c8_i32_22 : i32 to vector<8x1xi32>
    %82 = arith.cmpi slt, %80, %81 : vector<8x1xi32>
    %cst_23 = arith.constant 0.000000e+00 : f32
    %83 = vector.broadcast %cst_23 : f32 to vector<8x1xf32>
    %84 = arith.select %82, %74, %83 : vector<8x1xi1>, vector<8x1xf32>
    %85 = arith.addf %59, %84 : vector<8x1xf32>
    %86 = vector.extract_strided_slice %3 {offsets = [0, 96], sizes = [8, 32], strides = [1, 1]} : vector<8x128xf32> to vector<8x32xf32>
    %87 = vector.extract_strided_slice %4 {offsets = [0, 96], sizes = [8, 32], strides = [1, 1]} : vector<8x128xf32> to vector<8x32xf32>
    %88 = arith.mulf %86, %86 : vector<8x32xf32>
    %cst_24 = arith.constant dense<0.000000e+00> : vector<8xf32>
    %89 = vector.multi_reduction <add>, %88, %cst_24 [1] : vector<8x32xf32> to vector<8xf32>
    %90 = vector.shape_cast %89 : vector<8xf32> to vector<8x1xf32>
    %91 = math.sqrt %90 : vector<8x1xf32>
    %92 = arith.mulf %87, %87 : vector<8x32xf32>
    %cst_25 = arith.constant dense<0.000000e+00> : vector<8xf32>
    %93 = vector.multi_reduction <add>, %92, %cst_25 [1] : vector<8x32xf32> to vector<8xf32>
    %94 = vector.shape_cast %93 : vector<8xf32> to vector<8x1xf32>
    %95 = math.sqrt %94 : vector<8x1xf32>
    %96 = arith.subf %91, %95 : vector<8x1xf32>
    %cst_26 = arith.constant 1.000000e+00 : f32
    %97 = vector.broadcast %cst_26 : f32 to vector<8x1xf32>
    %98 = arith.addf %96, %97 : vector<8x1xf32>
    %cst_27 = arith.constant 0.000000e+00 : f32
    %99 = vector.broadcast %cst_27 : f32 to vector<8x1xf32>
    %100 = arith.maximumf %98, %99 : vector<8x1xf32>
    %c4_i32_28 = arith.constant 4 : i32
    %101 = vector.broadcast %c4_i32_28 : i32 to vector<8x1xi32>
    %102 = arith.muli %5, %101 : vector<8x1xi32>
    %103 = vector.broadcast %6 : i32 to vector<8x1xi32>
    %104 = arith.addi %103, %102 : vector<8x1xi32>
    %c3_i32 = arith.constant 3 : i32
    %105 = vector.broadcast %c3_i32 : i32 to vector<8x1xi32>
    %106 = arith.addi %104, %105 : vector<8x1xi32>
    %c8_i32_29 = arith.constant 8 : i32
    %107 = vector.broadcast %c8_i32_29 : i32 to vector<8x1xi32>
    %108 = arith.cmpi slt, %106, %107 : vector<8x1xi32>
    %cst_30 = arith.constant 0.000000e+00 : f32
    %109 = vector.broadcast %cst_30 : f32 to vector<8x1xf32>
    %110 = arith.select %108, %100, %109 : vector<8x1xi1>, vector<8x1xf32>
    %111 = arith.addf %85, %110 : vector<8x1xf32>
    %cst_31 = arith.constant dense<0.000000e+00> : vector<1xf32>
    %112 = vector.multi_reduction <add>, %111, %cst_31 [0] : vector<8x1xf32> to vector<1xf32>
    %113 = vector.shape_cast %112 : vector<1xf32> to vector<1x1xf32>
    %114 = vector.shape_cast %113 : vector<1x1xf32> to vector<1x1x1xf32>
    %c0_32 = arith.constant 0 : index
    %c0_33 = arith.constant 0 : index
    %c0_34 = arith.constant 0 : index
    %115 = vector.load %arg4[%c0_32, %c0_33, %c0_34] : memref<1x1x1xf32, #tpu.memory_space<vmem>>, vector<1x1x1xf32>
    tpu.vector_store %arg4[%c0_32, %c0_33, %c0_34], %114 {strides = array<i32>} : memref<1x1x1xf32, #tpu.memory_space<vmem>>, vector<1x1x1xf32>,
    return
  }
  func.func @transform_0(%arg0: i32) -> (i32, i32) {
    %c0_i32 = arith.constant 0 : i32
    %c0_i32_0 = arith.constant 0 : i32
    return %arg0, %c0_i32 : i32, i32
  }
  func.func @transform_1(%arg0: i32) -> (i32, i32) {
    %c0_i32 = arith.constant 0 : i32
    %c0_i32_0 = arith.constant 0 : i32
    return %arg0, %c0_i32 : i32, i32
  }
  func.func @transform_2(%arg0: i32) -> (i32, i32) {
    %c0_i32 = arith.constant 0 : i32
    %c0_i32_0 = arith.constant 0 : i32
    return %arg0, %c0_i32 : i32, i32
  }
  func.func @transform_3(%arg0: i32) -> (i32, i32, i32) {
    %c0_i32 = arith.constant 0 : i32
    %c0_i32_0 = arith.constant 0 : i32
    %c0_i32_1 = arith.constant 0 : i32
    return %arg0, %c0_i32, %c0_i32_0 : i32, i32, i32
  }
}

</mosaic_0001>

<llo_original>
// kernel: tpu_custom_call.1
$region0: #{tpu_custom_call.1}
  #allocation0 [shape = 'u32[]', space=smem, size = 0x4, offset = 0x4, fixed_abs, tag = 'smem constant byte address 0x4 - core index']
  #allocation1 [shape = 'u32[144,128]{1,0:T(1,128)}', space=vmem, size = 0x12000, scoped, tag = 'internal scratch']
  %s0 = inlined_call_operand.hbm [shape: f32[2,128], index: 0, kind: input, shape index: {}]
  %s1 = inlined_call_operand.hbm [shape: f32[2,128], index: 1, kind: input, shape index: {}]
  %s2 = inlined_call_operand.vmem [shape: f32[2,128], index: 2, kind: input, shape index: {}]
  %s3 = inlined_call_operand.hbm [shape: f32[1,1,1], index: 3, kind: output, shape index: {}]
  %s4 = sld [smem:[#allocation0]]
  $region30: #{tpu_custom_call.1} parent=0
    _
  %s6 = ssub.s32 1, %s4
  %s7 = scalar_select 0, %s6, %s4
  $region1: #{tpu_custom_call.1} parent=0
    #allocation2 [shape = 'u8[4096]{0}', space=vmem, size = 0x1000, scoped, tag = 'input window, operand 0, single buffered']
    #allocation3 [shape = 's32[1]{0}', space=sflag, size = 0x4, scoped, tag = 'scoped memory for tpu_custom_call.1']
    #allocation4 [shape = 's32[1]{0}', space=sflag, size = 0x4, scoped, tag = 'scoped memory for tpu_custom_call.1']
    #allocation5 [shape = 'u8[4096]{0}', space=vmem, size = 0x1000, scoped, tag = 'input window, operand 1, single buffered']
    #allocation6 [shape = 's32[1]{0}', space=sflag, size = 0x4, scoped, tag = 'scoped memory for tpu_custom_call.1']
    #allocation7 [shape = 'u8[512]{0}', space=vmem, size = 0x400, scoped, tag = 'output window, operand 0, single buffered']
    %8 = vsyncpa [#allocation3], 0
    %9 = vsyncpa [#allocation6], 0
    %10 = vsyncpa [#allocation4], 0
    // Predicated region
    $region2: #{tpu_custom_call.1} parent=1 // pred_check
      _
    $region3: #{tpu_custom_call.1} parent=1 // pred_check_branch
      %12 = sbr.rel (0) target = $region5
    $region4: #{tpu_custom_call.1} parent=1 // pred_region
      %s14 = ssub.s32 128, 32
      %15 = vsyncadd [#allocation3], %s14
      %s16 = sshll.u32 [#allocation2], 4
      %s17 = int_to_ptr.vmem [resolvable:$true] %s16
      %22 = dma.hbm_to_vmem [thread:$0]  %s0, 32, %s17, [#allocation3], 32, 32, 2
    $region5: #{tpu_custom_call.1} parent=1 // pred_fallthru
      _
    // Predicated region
    $region6: #{tpu_custom_call.1} parent=1 // pred_check
      _
    $region7: #{tpu_custom_call.1} parent=1 // pred_check_branch
      %24 = sbr.rel (0) target = $region9
    $region8: #{tpu_custom_call.1} parent=1 // pred_region
      %s26 = ssub.s32 128, 32
      %27 = vsyncadd [#allocation6], %s26
      %s28 = sshll.u32 [#allocation5], 4
      %s29 = int_to_ptr.vmem [resolvable:$true] %s28
      %34 = dma.hbm_to_vmem [thread:$0]  %s1, 32, %s29, [#allocation6], 32, 32, 2
    $region9: #{tpu_custom_call.1} parent=1 // pred_fallthru
      _
    // Predicated region
    $region10: #{tpu_custom_call.1} parent=1 // pred_check
      _
    $region11: #{tpu_custom_call.1} parent=1 // pred_check_branch
      %36 = sbr.rel (0) target = $region13
    $region12: #{tpu_custom_call.1} parent=1 // pred_region
      _
    $region13: #{tpu_custom_call.1} parent=1 // pred_fallthru
      _
    // Predicated region
    $region14: #{tpu_custom_call.1} parent=1 // pred_check
      _
    $region15: #{tpu_custom_call.1} parent=1 // pred_check_branch
      %38 = sbr.rel (0) target = $region17
    $region16: #{tpu_custom_call.1} parent=1 // pred_region
      %39 = dma.done [#allocation3], 128
    $region17: #{tpu_custom_call.1} parent=1 // pred_fallthru
      _
    // Predicated region
    $region18: #{tpu_custom_call.1} parent=1 // pred_check
      _
    $region19: #{tpu_custom_call.1} parent=1 // pred_check_branch
      %41 = sbr.rel (0) target = $region21
    $region20: #{tpu_custom_call.1} parent=1 // pred_region
      %42 = dma.done [#allocation6], 128
    $region21: #{tpu_custom_call.1} parent=1 // pred_fallthru
      _
    %v43 = vld [vmem:[#allocation2] sm:$0xff]
    %v44 = vld [vmem:[#allocation5] sm:$0xff]
    %v45 = vld [vmem:[%s2] sm:$0xff]
    %v46 = vsub.f32 %v43, %v44
    %v47 = vsub.f32 %v43, %v45
    %v48 = vlaneseq
    %v49 = vshrl.u32 %v48, 7
    %s50 = smul.u32 0, 32
    %v51 = vmul.f32 %v46, %v46
    %vm52 = vcmask 261120
    %v53 = vsel %vm52, %v51, 0.0
    %54 = vadd.xlane.f32.xlu0 %v53
    %v55 = vpop.xlane.xlu0 %54
    %v56 = vrsqrt.pop %v55
    %v57 = vmul.f32 %v55, %v56
    %vm58 = vcmp.eq.f32.partialorder %v55, inf
    %v59 = vsel %vm58, %v55, %v57
    %vm60 = vcmp.eq.f32.partialorder %v55, 0.0
    %v61 = vand.u32 %v55, 2147483648
    %v62 = vsel %vm60, %v61, %v59
    %v63 = vmul.f32 %v47, %v47
    %v64 = vsel %vm52, %v63, 0.0
    %65 = vadd.xlane.f32.xlu0 %v64
    %v66 = vpop.xlane.xlu0 %65
    %v67 = vrsqrt.pop %v66
    %v68 = vmul.f32 %v66, %v67
    %vm69 = vcmp.eq.f32.partialorder %v66, inf
    %v70 = vsel %vm69, %v66, %v68
    %vm71 = vcmp.eq.f32.partialorder %v66, 0.0
    %v72 = vand.u32 %v66, 2147483648
    %v73 = vsel %vm71, %v72, %v70
    %v74 = vsub.f32 %v62, %v73
    %v75 = vadd.f32 %v74, 1.0
    %v76 = vmax.f32 %v75, 0.0
    %v77 = vmul.u32 %v49, 4
    %v78 = vstv %s50
    %v79 = vadd.s32 %v78, %v77
    %vm80 = vcmp.lt.s32.totalorder %v79, 8
    %v81 = vsel %vm80, %v76, 0.0
    %v82 = vadd.f32 %v81, 0.0
    %84 = vrot.lane.b32.xlu0 %v51, 96
    %v85 = vpop.permute.xlu0 %84
    %v87 = vsel %vm52, %v85, 0.0
    %88 = vadd.xlane.f32.xlu0 %v87
    %v89 = vpop.xlane.xlu0 %88
    %v90 = vrsqrt.pop %v89
    %v91 = vmul.f32 %v89, %v90
    %vm92 = vcmp.eq.f32.partialorder %v89, inf
    %v93 = vsel %vm92, %v89, %v91
    %vm94 = vcmp.eq.f32.partialorder %v89, 0.0
    %v95 = vand.u32 %v89, 2147483648
    %v96 = vsel %vm94, %v95, %v93
    %98 = vrot.lane.b32.xlu0 %v63, 96
    %v99 = vpop.permute.xlu0 %98
    %v101 = vsel %vm52, %v99, 0.0
    %102 = vadd.xlane.f32.xlu0 %v101
    %v103 = vpop.xlane.xlu0 %102
    %v104 = vrsqrt.pop %v103
    %v105 = vmul.f32 %v103, %v104
    %vm106 = vcmp.eq.f32.partialorder %v103, inf
    %v107 = vsel %vm106, %v103, %v105
    %vm108 = vcmp.eq.f32.partialorder %v103, 0.0
    %v109 = vand.u32 %v103, 2147483648
    %v110 = vsel %vm108, %v109, %v107
    %v111 = vsub.f32 %v96, %v110
    %v112 = vadd.f32 %v111, 1.0
    %v113 = vmax.f32 %v112, 0.0
    %v114 = vadd.s32 %v79, 1
    %vm115 = vcmp.lt.s32.totalorder %v114, 8
    %v116 = vsel %vm115, %v113, 0.0
    %v117 = vadd.f32 %v82, %v116
    %118 = vrot.lane.b32.xlu0 %v51, 64
    %v119 = vpop.permute.xlu0 %118
    %v121 = vsel %vm52, %v119, 0.0
    %122 = vadd.xlane.f32.xlu0 %v121
    %v123 = vpop.xlane.xlu0 %122
    %v124 = vrsqrt.pop %v123
    %v125 = vmul.f32 %v123, %v124
    %vm126 = vcmp.eq.f32.partialorder %v123, inf
    %v127 = vsel %vm126, %v123, %v125
    %vm128 = vcmp.eq.f32.partialorder %v123, 0.0
    %v129 = vand.u32 %v123, 2147483648
    %v130 = vsel %vm128, %v129, %v127
    %131 = vrot.lane.b32.xlu0 %v63, 64
    %v132 = vpop.permute.xlu0 %131
    %v134 = vsel %vm52, %v132, 0.0
    %135 = vadd.xlane.f32.xlu0 %v134
    %v136 = vpop.xlane.xlu0 %135
    %v137 = vrsqrt.pop %v136
    %v138 = vmul.f32 %v136, %v137
    %vm139 = vcmp.eq.f32.partialorder %v136, inf
    %v140 = vsel %vm139, %v136, %v138
    %vm141 = vcmp.eq.f32.partialorder %v136, 0.0
    %v142 = vand.u32 %v136, 2147483648
    %v143 = vsel %vm141, %v142, %v140
    %v144 = vsub.f32 %v130, %v143
    %v145 = vadd.f32 %v144, 1.0
    %v146 = vmax.f32 %v145, 0.0
    %v147 = vadd.s32 %v79, 2
    %vm148 = vcmp.lt.s32.totalorder %v147, 8
    %v149 = vsel %vm148, %v146, 0.0
    %v150 = vadd.f32 %v117, %v149
    %151 = vrot.lane.b32.xlu0 %v51, 32
    %v152 = vpop.permute.xlu0 %151
    %v154 = vsel %vm52, %v152, 0.0
    %155 = vadd.xlane.f32.xlu0 %v154
    %v156 = vpop.xlane.xlu0 %155
    %v157 = vrsqrt.pop %v156
    %v158 = vmul.f32 %v156, %v157
    %vm159 = vcmp.eq.f32.partialorder %v156, inf
    %v160 = vsel %vm159, %v156, %v158
    %vm161 = vcmp.eq.f32.partialorder %v156, 0.0
    %v162 = vand.u32 %v156, 2147483648
    %v163 = vsel %vm161, %v162, %v160
    %164 = vrot.lane.b32.xlu0 %v63, 32
    %v165 = vpop.permute.xlu0 %164
    %v167 = vsel %vm52, %v165, 0.0
    %168 = vadd.xlane.f32.xlu0 %v167
    %v169 = vpop.xlane.xlu0 %168
    %v170 = vrsqrt.pop %v169
    %v171 = vmul.f32 %v169, %v170
    %vm172 = vcmp.eq.f32.partialorder %v169, inf
    %v173 = vsel %vm172, %v169, %v171
    %vm174 = vcmp.eq.f32.partialorder %v169, 0.0
    %v175 = vand.u32 %v169, 2147483648
    %v176 = vsel %vm174, %v175, %v173
    %v177 = vsub.f32 %v163, %v176
    %v178 = vadd.f32 %v177, 1.0
    %v179 = vmax.f32 %v178, 0.0
    %v180 = vadd.s32 %v79, 3
    %vm181 = vcmp.lt.s32.totalorder %v180, 8
    %v182 = vsel %vm181, %v179, 0.0
    %v183 = vadd.f32 %v150, %v182
    %v184 = vrot.slane %v183, 4
    %v185 = vadd.f32 %v183, %v184
    %v186 = vrot.slane %v185, 2
    %v187 = vadd.f32 %v185, %v186
    %v188 = vrot.slane %v187, 1
    %v189 = vadd.f32 %v187, %v188
    %vm190 = vcmask 0
    %191 = vst.msk [vmem:[#allocation7] sm:$0x1] %vm190, %v189
    // Predicated region
    $region22: #{tpu_custom_call.1} parent=1 // pred_check
      _
    $region23: #{tpu_custom_call.1} parent=1 // pred_check_branch
      %193 = sbr.rel (0) target = $region25
    $region24: #{tpu_custom_call.1} parent=1 // pred_region
      %s195 = ssub.s32 16, 16
      %196 = vsyncadd [#allocation4], %s195
      %s198 = sshll.u32 [#allocation7], 4
      %s199 = int_to_ptr.vmem [resolvable:$true] %s198
      %201 = dma.vmem_to_hbm [thread:$0]  %s199, 16, %s3, [#allocation4]
    $region25: #{tpu_custom_call.1} parent=1 // pred_fallthru
      _
    // Predicated region
    $region26: #{tpu_custom_call.1} parent=1 // pred_check
      _
    $region27: #{tpu_custom_call.1} parent=1 // pred_check_branch
      %203 = sbr.rel (0) target = $region29
    $region28: #{tpu_custom_call.1} parent=1 // pred_region
      %204 = dma.done [#allocation4], 16
    $region29: #{tpu_custom_call.1} parent=1 // pred_fallthru
      _
    %205 = vsyncpa [#allocation3], 1
    %206 = vsyncpa [#allocation6], 1
    %207 = vsyncpa [#allocation4], 1

</llo_original>
